<compile_context>
chip_gen: v5e
topology: v5e:2x2
jax: 0.10.0
libtpu: 0.0.40
codegen_flags: <defaults>
</compile_context>

<pallas_src>
import functools

import jax
import jax.numpy as jnp
from jax.experimental import pallas as pl
from jax.experimental.pallas import tpu as pltpu


def _conv_relu_kernel(*refs, kh_size, kw_size, use_halo):
    """One (batch, H-tile) grid step of a stride-1 conv + bias + ReLU.

    With halo:    (x_ref, halo_ref, w_ref, b_ref, o_ref)
    Without halo: (x_ref, w_ref, b_ref, o_ref)

    x_ref:    (1, main_rows, W_used, C_in)   bf16 main input rows
    halo_ref: (1, KH-1,      W_used, C_in)   bf16 overlap rows (next tile's top)
    w_ref:    (KH*KW*C_in, C_out_pad)        bf16 im2col-ordered weight
    b_ref:    (1, C_out_pad)                 f32 bias
    o_ref:    (1, TILE_H, W_out, C_out_pad)  output tile
    """
    if use_halo:
        x_ref, halo_ref, w_ref, b_ref, o_ref = refs
        x = jnp.concatenate([x_ref[0], halo_ref[0]], axis=0)
    else:
        x_ref, w_ref, b_ref, o_ref = refs
        x = x_ref[0]

    _, tile_h, w_out, c_out_pad = o_ref.shape
    c_in = x_ref.shape[3]

    # Build the im2col slab once per tile: contraction dim = KH*KW*C_in, so the
    # whole tile is ONE MXU matmul instead of KH*KW tiny (K=C_in) matmuls.
    views = []
    for dh in range(kh_size):
        for dw in range(kw_size):
            views.append(x[dh:dh + tile_h, dw:dw + w_out, :])
    slab = views[0] if len(views) == 1 else jnp.concatenate(views, axis=-1)
    slab = slab.reshape(tile_h * w_out, kh_size * kw_size * c_in)

    acc = jnp.dot(slab, w_ref[...], preferred_element_type=jnp.float32)
    acc = acc + b_ref[...]          # bias (f32 epilogue on the accumulator)
    acc = jnp.maximum(acc, 0.0)     # ReLU
    o_ref[0] = acc.reshape(tile_h, w_out, c_out_pad).astype(o_ref.dtype)


def _pick_tile_h(h_out, halo, in_row_bytes, out_row_bytes, budget_bytes=2 << 20):
    """Largest TILE_H dividing h_out, multiple of the halo (so the halo BlockSpec
    lands on block boundaries), with per-tile input+output bytes under budget."""
    step = max(halo, 1)
    best = None
    for t in range(step, h_out + 1, step):
        if h_out % t:
            continue
        if (t + halo) * in_row_bytes + t * out_row_bytes <= budget_bytes:
            best = t
    return best


def _conv_s1_relu(x_nhwc, w2d, b2d, *, kh, kw, h_out, w_out, out_dtype, tile_h=None):
    """Stride-1 VALID conv (input already padded/trimmed) + bias + ReLU.

    x_nhwc: (N, h_out+kh-1, w_out+kw-1, C_in)  compute dtype (bf16)
    w2d:    (kh*kw*C_in, C_out_pad)            compute dtype
    b2d:    (1, C_out_pad)                     f32
    Returns (N, h_out, w_out, C_out_pad) in out_dtype.
    """
    n, h_used, w_used, c_in = x_nhwc.shape
    k_dim, c_out_pad = w2d.shape
    assert h_used == h_out + kh - 1 and w_used == w_out + kw - 1
    assert k_dim == kh * kw * c_in

    cd_isz = jnp.dtype(x_nhwc.dtype).itemsize
    out_isz = jnp.dtype(out_dtype).itemsize

    halo = kh - 1
    if tile_h is not None:
        if h_out % tile_h or (halo and tile_h % halo):
            raise ValueError("tile_h must divide h_out and be a multiple of kh-1")
        th = tile_h
    else:
        th = _pick_tile_h(h_out, halo,
                          in_row_bytes=w_used * c_in * cd_isz,
                          out_row_bytes=w_out * c_out_pad * out_isz)
        if th is None:
            # TODO(synk): awkward h_out (no divisor that is a multiple of kh-1)
            # falls back to a single whole-image H block per batch element.
            th, halo = h_out, 0

    n_h = h_out // th
    use_halo = halo > 0
    main_rows = th if use_halo else th + kh - 1

    in_specs = [pl.BlockSpec((1, main_rows, w_used, c_in),
                             lambda b, i: (b, i, 0, 0))]
    operands = [x_nhwc]
    if use_halo:
        hb = th // halo  # exact: halo | th, so halo blocks land on boundaries
        in_specs.append(pl.BlockSpec((1, halo, w_used, c_in),
                                     lambda b, i, hb=hb: (b, (i + 1) * hb, 0, 0)))
        operands.append(x_nhwc)
    in_specs += [
        pl.BlockSpec((k_dim, c_out_pad), lambda b, i: (0, 0)),
        pl.BlockSpec((1, c_out_pad), lambda b, i: (0, 0)),
    ]
    operands += [w2d, b2d]

    kernel = functools.partial(_conv_relu_kernel, kh_size=kh, kw_size=kw,
                               use_halo=use_halo)

    flops = 2 * n * h_out * w_out * k_dim * c_out_pad
    bytes_accessed = int(
        x_nhwc.size * cd_isz
        + (n * n_h * halo * w_used * c_in * cd_isz if use_halo else 0)
        + w2d.size * cd_isz + b2d.size * 4
        + n * h_out * w_out * c_out_pad * out_isz)

    return pl.pallas_call(
        kernel,
        out_shape=jax.ShapeDtypeStruct((n, h_out, w_out, c_out_pad), out_dtype),
        grid_spec=pltpu.PrefetchScalarGridSpec(
            num_scalar_prefetch=0,
            grid=(n, n_h),
            in_specs=in_specs,
            out_specs=pl.BlockSpec((1, th, w_out, c_out_pad),
                                   lambda b, i: (b, i, 0, 0)),
        ),
        compiler_params=pltpu.CompilerParams(
            dimension_semantics=("parallel", "parallel"),
            vmem_limit_bytes=32 * 1024 * 1024,
        ),
        cost_estimate=pl.CostEstimate(flops=flops, transcendentals=0,
                                      bytes_accessed=bytes_accessed),
    )(*operands)


def conv_layer_forward(x_nchw, weight_oihw, bias, *, stride=1, padding=0,
                       tile_h=None, compute_dtype=jnp.bfloat16):
    """ConvLayer(in_c, out_c, k, stride, padding) forward with the module's
    default activation='relu', norm=None (=> bias=True)."""
    n, c_in, h, w = x_nchw.shape
    c_out, c_in_w, kh, kw = weight_oihw.shape
    assert c_in_w == c_in

    h_out = (h + 2 * padding - kh) // stride + 1
    w_out = (w + 2 * padding - kw) // stride + 1
    h_used = (h_out - 1) * stride + kh          # padded rows actually read
    w_used = (w_out - 1) * stride + kw          # padded cols actually read
    c_out_pad = ((c_out + 127) // 128) * 128    # lane-dense output / MXU N dim

    # ---- glue: transpose + pad + cast fuse into one XLA HBM pass ----
    x_nhwc = jnp.transpose(x_nchw, (0, 2, 3, 1)).astype(compute_dtype)
    x_pad = jnp.pad(x_nhwc, ((0, 0), (padding, padding), (padding, padding), (0, 0)))
    x_pad = x_pad[:, :h_used, :w_used, :]

    # Weight OIHW -> HWIO -> (KH*KW*C_in, C_out), padded to C_out_pad (im2col order).
    w2d = jnp.transpose(weight_oihw, (2, 3, 1, 0)).reshape(kh * kw * c_in, c_out)
    w2d = jnp.pad(w2d, ((0, 0), (0, c_out_pad - c_out))).astype(compute_dtype)
    b2d = jnp.pad(bias, (0, c_out_pad - c_out)).reshape(1, c_out_pad).astype(jnp.float32)

    if stride == 1:
        x_eff, kh_eff, kw_eff = x_pad, kh, kw
    else:
        # TODO(synk): stride>1 gathers the KH*KW taps into channels on the XLA
        # side (conv becomes a stride-1 1x1 conv); an in-kernel strided im2col
        # would avoid the ~kh*kw/stride^2 x input duplication.
        taps = []
        for dh in range(kh):
            for dw in range(kw):
                taps.append(x_pad[:, dh:dh + (h_out - 1) * stride + 1:stride,
                                  dw:dw + (w_out - 1) * stride + 1:stride, :])
        x_eff = jnp.concatenate(taps, axis=-1)   # (N, H_out, W_out, KH*KW*C_in)
        kh_eff, kw_eff = 1, 1

    out_nhwc = _conv_s1_relu(x_eff, w2d, b2d, kh=kh_eff, kw=kw_eff,
                             h_out=h_out, w_out=w_out,
                             out_dtype=x_nchw.dtype, tile_h=tile_h)

    # Slice away padded channels and return to NCHW.
    return jnp.transpose(out_nhwc[..., :c_out], (0, 3, 1, 2))


if __name__ == "__main__":
    key = jax.random.PRNGKey(0)
    k_x, k_w, k_b = jax.random.split(key, 3)

    N, C_IN, H, W = 2, 4, 16, 16
    C_OUT, K = 8, 3

    x = jax.random.normal(k_x, (N, C_IN, H, W), dtype=jnp.float32)
    fan_in = C_IN * K * K
    bound = 1.0 / (fan_in ** 0.5)
    weight = jax.random.uniform(k_w, (C_OUT, C_IN, K, K), jnp.float32, -bound, bound)
    bias = jax.random.uniform(k_b, (C_OUT,), jnp.float32, -bound, bound)

    def ref_conv(xx, ww, bb, stride, padding):
        r = jax.lax.conv_general_dilated(
            xx, ww, window_strides=(stride, stride),
            padding=((padding, padding), (padding, padding)),
            dimension_numbers=("NCHW", "OIHW", "NCHW"))
        return jnp.maximum(r + bb[None, :, None, None], 0.0)

    # bf16-operand reference (kernel feeds bf16 to the MXU, accumulates in f32).
    xb = x.astype(jnp.bfloat16).astype(jnp.float32)
    wb = weight.astype(jnp.bfloat16).astype(jnp.float32)

    # Config A: stride=1, padding=1 -> tiled halo path (2 H-tiles of 8 rows).
    out1 = jax.block_until_ready(
        conv_layer_forward(x, weight, bias, stride=1, padding=1, tile_h=8))
    ref1_bf = ref_conv(xb, wb, bias, 1, 1)
    ref1 = ref_conv(x, weight, bias, 1, 1)
    assert out1.shape == ref1.shape
    assert jnp.allclose(out1, ref1_bf, atol=5e-3, rtol=5e-3)   # exact-math check
    assert jnp.allclose(out1, ref1, atol=3e-2, rtol=3e-2)      # bf16-operand tol

    # Config B: stride=2, padding=1 -> tap-gather + 1x1 stride-1 path.
    out2 = jax.block_until_ready(
        conv_layer_forward(x, weight, bias, stride=2, padding=1))
    ref2_bf = ref_conv(xb, wb, bias, 2, 1)
    ref2 = ref_conv(x, weight, bias, 2, 1)
    assert out2.shape == ref2.shape
    assert jnp.allclose(out2, ref2_bf, atol=5e-3, rtol=5e-3)
    assert jnp.allclose(out2, ref2, atol=3e-2, rtol=3e-2)

    print("KERNEL_OK")
</pallas_src>

<mosaic_0001>
module attributes {stable_mosaic.version = 11 : i64} {
  func.func @_conv_relu_kernel(%arg0: i32, %arg1: i32, %arg2: memref<1x8x18x4xbf16, #tpu.memory_space<vmem>>, %arg3: memref<1x2x18x4xbf16, #tpu.memory_space<vmem>>, %arg4: memref<36x128xbf16, #tpu.memory_space<vmem>>, %arg5: memref<1x128xf32, #tpu.memory_space<vmem>>, %arg6: memref<1x8x16x128xf32, #tpu.memory_space<vmem>>) attributes {dimension_semantics = [#tpu.dimension_semantics<parallel>, #tpu.dimension_semantics<parallel>], iteration_bounds = array<i64: 2, 2>, scalar_prefetch = 0 : i64, scratch_operands = 0 : i64, tpu.core_type = #tpu.core_type<tc>, window_params = [{transform_indices = @transform_0, window_bounds = array<i64: 1, 8, 18, 4>}, {transform_indices = @transform_1, window_bounds = array<i64: 1, 2, 18, 4>}, {pipeline_mode = #tpu.pipeline_mode<synchronous>, transform_indices = @transform_2, window_bounds = array<i64: 36, 128>}, {pipeline_mode = #tpu.pipeline_mode<synchronous>, transform_indices = @transform_3, window_bounds = array<i64: 1, 128>}, {transform_indices = @transform_4, window_bounds = array<i64: 1, 8, 16, 128>}]} {
    %c0 = arith.constant 0 : index
    %c0_0 = arith.constant 0 : index
    %c0_1 = arith.constant 0 : index
    %c0_2 = arith.constant 0 : index
    %0 = vector.load %arg2[%c0, %c0_0, %c0_1, %c0_2] : memref<1x8x18x4xbf16, #tpu.memory_space<vmem>>, vector<1x8x18x4xbf16>
    %1 = vector.shape_cast %0 : vector<1x8x18x4xbf16> to vector<8x18x4xbf16>
    %c0_3 = arith.constant 0 : index
    %c0_4 = arith.constant 0 : index
    %c0_5 = arith.constant 0 : index
    %c0_6 = arith.constant 0 : index
    %2 = vector.load %arg3[%c0_3, %c0_4, %c0_5, %c0_6] : memref<1x2x18x4xbf16, #tpu.memory_space<vmem>>, vector<1x2x18x4xbf16>
    %3 = vector.shape_cast %2 : vector<1x2x18x4xbf16> to vector<2x18x4xbf16>
    %4 = tpu.concatenate %1, %3 in 0 : vector<8x18x4xbf16>, vector<2x18x4xbf16> -> vector<10x18x4xbf16>
    %5 = vector.extract_strided_slice %4 {offsets = [0, 0, 0], sizes = [8, 16, 4], strides = [1, 1, 1]} : vector<10x18x4xbf16> to vector<8x16x4xbf16>
    %6 = vector.extract_strided_slice %4 {offsets = [0, 1, 0], sizes = [8, 16, 4], strides = [1, 1, 1]} : vector<10x18x4xbf16> to vector<8x16x4xbf16>
    %7 = vector.extract_strided_slice %4 {offsets = [0, 2, 0], sizes = [8, 16, 4], strides = [1, 1, 1]} : vector<10x18x4xbf16> to vector<8x16x4xbf16>
    %8 = vector.extract_strided_slice %4 {offsets = [1, 0, 0], sizes = [8, 16, 4], strides = [1, 1, 1]} : vector<10x18x4xbf16> to vector<8x16x4xbf16>
    %9 = vector.extract_strided_slice %4 {offsets = [1, 1, 0], sizes = [8, 16, 4], strides = [1, 1, 1]} : vector<10x18x4xbf16> to vector<8x16x4xbf16>
    %10 = vector.extract_strided_slice %4 {offsets = [1, 2, 0], sizes = [8, 16, 4], strides = [1, 1, 1]} : vector<10x18x4xbf16> to vector<8x16x4xbf16>
    %11 = vector.extract_strided_slice %4 {offsets = [2, 0, 0], sizes = [8, 16, 4], strides = [1, 1, 1]} : vector<10x18x4xbf16> to vector<8x16x4xbf16>
    %12 = vector.extract_strided_slice %4 {offsets = [2, 1, 0], sizes = [8, 16, 4], strides = [1, 1, 1]} : vector<10x18x4xbf16> to vector<8x16x4xbf16>
    %13 = vector.extract_strided_slice %4 {offsets = [2, 2, 0], sizes = [8, 16, 4], strides = [1, 1, 1]} : vector<10x18x4xbf16> to vector<8x16x4xbf16>
    %14 = tpu.concatenate %5, %6, %7, %8, %9, %10, %11, %12, %13 in 2 : vector<8x16x4xbf16>, vector<8x16x4xbf16>, vector<8x16x4xbf16>, vector<8x16x4xbf16>, vector<8x16x4xbf16>, vector<8x16x4xbf16>, vector<8x16x4xbf16>, vector<8x16x4xbf16>, vector<8x16x4xbf16> -> vector<8x16x36xbf16>
    %15 = vector.shape_cast %14 : vector<8x16x36xbf16> to vector<128x36xbf16>
    %c0_7 = arith.constant 0 : index
    %c0_8 = arith.constant 0 : index
    %16 = vector.load %arg4[%c0_7, %c0_8] : memref<36x128xbf16, #tpu.memory_space<vmem>>, vector<36x128xbf16>
    %cst = arith.constant dense<0.000000e+00> : vector<128x128xf32>
    %17 = tpu.matmul %15, %16, %cst {dimension_numbers = #tpu.dot_dimension_numbers<[1], [0], [0], [1], [0, 0, 1, 1], [], []>} : vector<128x36xbf16>, vector<36x128xbf16>, vector<128x128xf32> -> vector<128x128xf32>
    %c0_9 = arith.constant 0 : index
    %c0_10 = arith.constant 0 : index
    %18 = vector.load %arg5[%c0_9, %c0_10] : memref<1x128xf32, #tpu.memory_space<vmem>>, vector<1x128xf32>
    %19 = vector.broadcast %18 : vector<1x128xf32> to vector<128x128xf32>
    %20 = arith.addf %17, %19 : vector<128x128xf32>
    %cst_11 = arith.constant 0.000000e+00 : f32
    %21 = vector.broadcast %cst_11 : f32 to vector<128x128xf32>
    %22 = arith.maximumf %20, %21 : vector<128x128xf32>
    %23 = vector.shape_cast %22 : vector<128x128xf32> to vector<8x16x128xf32>
    %c0_12 = arith.constant 0 : index
    %c0_13 = arith.constant 0 : index
    %c0_14 = arith.constant 0 : index
    %c0_15 = arith.constant 0 : index
    %24 = vector.load %arg6[%c0_12, %c0_13, %c0_14, %c0_15] : memref<1x8x16x128xf32, #tpu.memory_space<vmem>>, vector<1x8x16x128xf32>
    %25 = vector.shape_cast %24 : vector<1x8x16x128xf32> to vector<8x16x128xf32>
    %26 = vector.shape_cast %23 : vector<8x16x128xf32> to vector<1x8x16x128xf32>
    tpu.vector_store %arg6[%c0_12, %c0_13, %c0_14, %c0_15], %26 {strides = array<i32>} : memref<1x8x16x128xf32, #tpu.memory_space<vmem>>, vector<1x8x16x128xf32>,
    return
  }
  func.func @transform_0(%arg0: i32, %arg1: i32) -> (i32, i32, i32, i32) {
    %c0_i32 = arith.constant 0 : i32
    %c0_i32_0 = arith.constant 0 : i32
    %c0_i32_1 = arith.constant 0 : i32
    return %arg0, %arg1, %c0_i32, %c0_i32_0 : i32, i32, i32, i32
  }
  func.func @transform_1(%arg0: i32, %arg1: i32) -> (i32, i32, i32, i32) {
    %c1_i32 = arith.constant 1 : i32
    %0 = arith.addi %arg1, %c1_i32 : i32
    %c4_i32 = arith.constant 4 : i32
    %1 = arith.muli %0, %c4_i32 : i32
    %c0_i32 = arith.constant 0 : i32
    %c0_i32_0 = arith.constant 0 : i32
    %c0_i32_1 = arith.constant 0 : i32
    return %arg0, %1, %c0_i32, %c0_i32_0 : i32, i32, i32, i32
  }
  func.func @transform_2(%arg0: i32, %arg1: i32) -> (i32, i32) {
    %c0_i32 = arith.constant 0 : i32
    %c0_i32_0 = arith.constant 0 : i32
    %c0_i32_1 = arith.constant 0 : i32
    return %c0_i32, %c0_i32_0 : i32, i32
  }
  func.func @transform_3(%arg0: i32, %arg1: i32) -> (i32, i32) {
    %c0_i32 = arith.constant 0 : i32
    %c0_i32_0 = arith.constant 0 : i32
    %c0_i32_1 = arith.constant 0 : i32
    return %c0_i32, %c0_i32_0 : i32, i32
  }
  func.func @transform_4(%arg0: i32, %arg1: i32) -> (i32, i32, i32, i32) {
    %c0_i32 = arith.constant 0 : i32
    %c0_i32_0 = arith.constant 0 : i32
    %c0_i32_1 = arith.constant 0 : i32
    return %arg0, %arg1, %c0_i32, %c0_i32_0 : i32, i32, i32, i32
  }
}

</mosaic_0001>

<llo_original>
// kernel: tpu_custom_call.1
$region0: #{tpu_custom_call.1}
  #allocation0 [shape = 'u32[]', space=smem, size = 0x4, offset = 0x4, fixed_abs, tag = 'smem constant byte address 0x4 - core index']
  #allocation1 [shape = 'u32[72,128]{1,0:T(1,128)}', space=vmem, size = 0x9000, scoped, tag = 'internal scratch']
  %s0 = inlined_call_operand.vmem [shape: bf16[2,18,18,4], index: 0, kind: input, shape index: {}]
  %s1 = inlined_call_operand.vmem [shape: bf16[2,18,18,4], index: 1, kind: input, shape index: {}]
  %s2 = inlined_call_operand.vmem [shape: bf16[36,128], index: 2, kind: input, shape index: {}]
  %s3 = inlined_call_operand.vmem [shape: f32[1,128], index: 3, kind: input, shape index: {}]
  %s4 = inlined_call_operand.hbm [shape: f32[2,16,16,128], index: 4, kind: output, shape index: {}]
  %s5 = sld [smem:[#allocation0]]
  $region49: #{tpu_custom_call.1} parent=0
    _
  %s7 = ssub.s32 1, %s5
  %s8 = scalar_select 0, %s7, %s5
  $region1: #{tpu_custom_call.1} parent=0
    #allocation2 [shape = 'u8[131072]{0}', space=vmem, size = 0x20000, scoped, tag = 'output window, operand 0']
    #allocation3 [shape = 's32[2]{0}', space=sflag, size = 0x8, scoped, tag = 'scoped memory for tpu_custom_call.1']
    %9 = vsyncpa [#allocation3], 0
    %s10 = scalar_lea.sflag [#allocation3], 1
    %11 = vsyncpa %s10, 0
    loop: start=0, step=1, limit=6
    $region2: #{tpu_custom_call.1} parent=1 // loop_pre_header
      _
    $region3: #{tpu_custom_call.1} parent=1 // loop_header
      %s13 = sphi 0, %s17
      %p14 = scmp.ge.s32.totalorder %s13, 6
      %s20 = sphi 0, %s32
      %s21 = sphi 0, %s28
      %s22 = sphi 0, %s20
      %s23 = sphi 0, %s21
      %s24 = sphi 0, %s22
      %s25 = sphi 0, %s23
      %s37 = sphi 0, %s39
      %s40 = sphi 0, %s37
      %s41 = sphi 0, %s40
      %s57 = sphi 0, %s41
      %s69 = sphi 0, %s71
      %s72 = sphi 0, %s69
      %s73 = sphi 0, %s72
      %s89 = sphi 0, %s73
      %s93 = sphi 0, %s93
      %s95 = sphi 0, %s93
      %s96 = sphi 0, %s95
      %s110 = sphi 0, %s96
      %s114 = sphi 0, %s114
      %s116 = sphi 0, %s114
      %s117 = sphi 0, %s116
      %s131 = sphi 0, %s117
      %s139 = sphi 0, %s141
      %s142 = sphi 0, %s139
      %s143 = sphi 0, %s142
      %s159 = sphi 0, %s143
    $region4: #{tpu_custom_call.1} parent=1 // loop_header_branch
      %16 = sbr.rel (%p14) target = $region8
    $region5: #{tpu_custom_call.1} parent=1 // loop_body
      %s18 = ssub.s32 %s13, 1
      %s19 = ssub.s32 %s13, 2
      %s26 = sadd.s32 1, %s21
      %p27 = scmp.ge.s32.totalorder %s26, 2
      %s28 = scalar_select %p27, 0, %s26
      %s29 = sadd.s32 1, %s20
      %s30 = scalar_select %p27, %s29, %s20
      %p31 = scmp.ge.s32.totalorder %s30, 2
      %s32 = scalar_select %p31, 0, %s30
      %s33 = ssub.s32 %s20, %s32
      %s34 = ssub.s32 %s21, %s28
      %s35 = sor.u32 %s33, %s34
      %p36 = scmp.eq.s32.totalorder %s35, 0
      %s38 = sadd.s32 %s37, 1
      %s39 = scalar_select %p36, %s37, %s38
      %p42 = pneg %p36
      %p43 = scmp.eq.s32.totalorder %s13, 3
      %p44 = por %p42, %p43
      %p45 = scmp.ne.s32.totalorder %s37, %s40
      %p46 = scmp.eq.s32.totalorder %s13, 0
      %p47 = por %p45, %p46
      %p48 = scmp.ne.s32.totalorder %s37, %s40
      %p49 = scmp.eq.s32.totalorder %s18, 3
      %p50 = por %p48, %p49
      %p51 = scmp.ne.s32.totalorder %s40, %s41
      %p52 = scmp.eq.s32.totalorder %s18, 0
      %p53 = por %p51, %p52
      %p54 = scmp.ne.s32.totalorder %s40, %s41
      %p55 = scmp.eq.s32.totalorder %s19, 3
      %p56 = por %p54, %p55
      %p58 = scmp.ne.s32.totalorder %s41, %s57
      %p59 = scmp.eq.s32.totalorder %s19, 0
      %p60 = por %p58, %p59
      %s61 = sadd.s32 %s21, 1
      %s62 = smul.u32 %s61, 4
      %s63 = sadd.s32 %s28, 1
      %s64 = smul.u32 %s63, 4
      %s65 = ssub.s32 %s20, %s32
      %s66 = ssub.s32 %s62, %s64
      %s67 = sor.u32 %s65, %s66
      %p68 = scmp.eq.s32.totalorder %s67, 0
      %s70 = sadd.s32 %s69, 1
      %s71 = scalar_select %p68, %s69, %s70
      %p74 = pneg %p68
      %p75 = scmp.eq.s32.totalorder %s13, 3
      %p76 = por %p74, %p75
      %p77 = scmp.ne.s32.totalorder %s69, %s72
      %p78 = scmp.eq.s32.totalorder %s13, 0
      %p79 = por %p77, %p78
      %p80 = scmp.ne.s32.totalorder %s69, %s72
      %p81 = scmp.eq.s32.totalorder %s18, 3
      %p82 = por %p80, %p81
      %p83 = scmp.ne.s32.totalorder %s72, %s73
      %p84 = scmp.eq.s32.totalorder %s18, 0
      %p85 = por %p83, %p84
      %p86 = scmp.ne.s32.totalorder %s72, %s73
      %p87 = scmp.eq.s32.totalorder %s19, 3
      %p88 = por %p86, %p87
      %p90 = scmp.ne.s32.totalorder %s73, %s89
      %p91 = scmp.eq.s32.totalorder %s19, 0
      %p92 = por %p90, %p91
      %s94 = sadd.s32 %s93, 1
      %p97 = scmp.eq.s32.totalorder %s13, 3
      %p98 = scmp.ne.s32.totalorder %s93, %s95
      %p99 = scmp.eq.s32.totalorder %s13, 0
      %p100 = por %p98, %p99
      %p101 = scmp.ne.s32.totalorder %s93, %s95
      %p102 = scmp.eq.s32.totalorder %s18, 3
      %p103 = por %p101, %p102
      %p104 = scmp.ne.s32.totalorder %s95, %s96
      %p105 = scmp.eq.s32.totalorder %s18, 0
      %p106 = por %p104, %p105
      %p107 = scmp.ne.s32.totalorder %s95, %s96
      %p108 = scmp.eq.s32.totalorder %s19, 3
      %p109 = por %p107, %p108
      %p111 = scmp.ne.s32.totalorder %s96, %s110
      %p112 = scmp.eq.s32.totalorder %s19, 0
      %p113 = por %p111, %p112
      %s115 = sadd.s32 %s114, 1
      %p118 = scmp.eq.s32.totalorder %s13, 3
      %p119 = scmp.ne.s32.totalorder %s114, %s116
      %p120 = scmp.eq.s32.totalorder %s13, 0
      %p121 = por %p119, %p120
      %p122 = scmp.ne.s32.totalorder %s114, %s116
      %p123 = scmp.eq.s32.totalorder %s18, 3
      %p124 = por %p122, %p123
      %p125 = scmp.ne.s32.totalorder %s116, %s117
      %p126 = scmp.eq.s32.totalorder %s18, 0
      %p127 = por %p125, %p126
      %p128 = scmp.ne.s32.totalorder %s116, %s117
      %p129 = scmp.eq.s32.totalorder %s19, 3
      %p130 = por %p128, %p129
      %p132 = scmp.ne.s32.totalorder %s117, %s131
      %p133 = scmp.eq.s32.totalorder %s19, 0
      %p134 = por %p132, %p133
      %s135 = ssub.s32 %s20, %s32
      %s136 = ssub.s32 %s21, %s28
      %s137 = sor.u32 %s135, %s136
      %p138 = scmp.eq.s32.totalorder %s137, 0
      %s140 = sadd.s32 %s139, 1
      %s141 = scalar_select %p138, %s139, %s140
      %p144 = pneg %p138
      %p145 = scmp.eq.s32.totalorder %s13, 3
      %p146 = por %p144, %p145
      %p147 = scmp.ne.s32.totalorder %s139, %s142
      %p148 = scmp.eq.s32.totalorder %s13, 0
      %p149 = por %p147, %p148
      %p150 = scmp.ne.s32.totalorder %s139, %s142
      %p151 = scmp.eq.s32.totalorder %s18, 3
      %p152 = por %p150, %p151
      %p153 = scmp.ne.s32.totalorder %s142, %s143
      %p154 = scmp.eq.s32.totalorder %s18, 0
      %p155 = por %p153, %p154
      %p156 = scmp.ne.s32.totalorder %s142, %s143
      %p157 = scmp.eq.s32.totalorder %s19, 3
      %p158 = por %p156, %p157
      %p160 = scmp.ne.s32.totalorder %s143, %s159
      %p161 = scmp.eq.s32.totalorder %s19, 0
      %p162 = por %p160, %p161
      %p163 = scmp.le.s32.totalorder 1, %s13
      %p164 = scmp.lt.s32.totalorder %s13, 5
      %p165 = pnand %p163, %p164
      %p166 = pneg %p165
      // Predicated region
      $region9: #{tpu_custom_call.1} parent=5 // pred_check
        _
      $region10: #{tpu_custom_call.1} parent=5 // pred_check_branch
        %168 = sbr.rel (%p165) target = $region12
      $region11: #{tpu_custom_call.1} parent=5 // pred_region
        %s169 = ssub.s32 %s13, 1
        // Predicated region
        $region13: #{tpu_custom_call.1} parent=11 // pred_check
          %p170 = pneg %p106
        $region14: #{tpu_custom_call.1} parent=11 // pred_check_branch
          %172 = sbr.rel (%p170) target = $region16
        $region15: #{tpu_custom_call.1} parent=11 // pred_region
          _
        $region16: #{tpu_custom_call.1} parent=11 // pred_fallthru
          _
        // Predicated region
        $region17: #{tpu_custom_call.1} parent=11 // pred_check
          %p173 = pneg %p127
        $region18: #{tpu_custom_call.1} parent=11 // pred_check_branch
          %175 = sbr.rel (%p173) target = $region20
        $region19: #{tpu_custom_call.1} parent=11 // pred_region
          _
        $region20: #{tpu_custom_call.1} parent=11 // pred_fallthru
          _
      $region12: #{tpu_custom_call.1} parent=5 // pred_fallthru
        _
      %p176 = scmp.lt.s32.totalorder %s13, 4
      // Predicated region
      $region21: #{tpu_custom_call.1} parent=5 // pred_check
        %p177 = pneg %p176
      $region22: #{tpu_custom_call.1} parent=5 // pred_check_branch
        %179 = sbr.rel (%p177) target = $region24
      $region23: #{tpu_custom_call.1} parent=5 // pred_region
        // Predicated region
        $region25: #{tpu_custom_call.1} parent=23 // pred_check
          %p180 = pneg %p47
        $region26: #{tpu_custom_call.1} parent=23 // pred_check_branch
          %182 = sbr.rel (%p180) target = $region28
        $region27: #{tpu_custom_call.1} parent=23 // pred_region
          %s183 = smul.u32 8, %s21
          %s184 = ssub.s32 18, %s183
          %p185 = scmp.lt.s32.totalorder %s184, 8
          %s186 = scalar_select %p185, %s184, 8
          %s187 = smul.u32 4, %s186
          %s188 = smul.u32 %s187, 3
          %p189 = scmp.lt.s32.totalorder %s20, 1
          %s190 = scalar_select %p189, %s20, 1
          %p191 = scmp.lt.s32.totalorder %s183, 17
          %s192 = scalar_select %p191, %s183, 17
          %s193 = smul.addr %s192, 3
          %s194 = smul.addr %s190, 54
          %s195 = sadd.s32 %s193, %s194
          %s196 = smul.addr %s195, 4
          %s197 = scalar_lea.vmem %s0, %s196
          %s198 = smul.u32 8, %s21
          %s199 = ssub.s32 18, %s198
          %p200 = scmp.lt.s32.totalorder %s199, 8
          %s201 = scalar_select %p200, %s199, 8
          %s202 = smul.u32 4, %s201
          %s203 = smul.u32 %s202, 3
        $region28: #{tpu_custom_call.1} parent=23 // pred_fallthru
          _
        // Predicated region
        $region29: #{tpu_custom_call.1} parent=23 // pred_check
          %p204 = pneg %p79
        $region30: #{tpu_custom_call.1} parent=23 // pred_check_branch
          %206 = sbr.rel (%p204) target = $region32
        $region31: #{tpu_custom_call.1} parent=23 // pred_region
          %s207 = sadd.s32 %s21, 1
          %s208 = smul.u32 %s207, 4
          %s209 = smul.u32 2, %s208
          %p210 = scmp.lt.s32.totalorder %s20, 1
          %s211 = scalar_select %p210, %s20, 1
          %p212 = scmp.lt.s32.totalorder %s209, 17
          %s213 = scalar_select %p212, %s209, 17
          %s214 = smul.addr %s213, 3
          %s215 = smul.addr %s211, 54
          %s216 = sadd.s32 %s214, %s215
          %s217 = smul.addr %s216, 4
          %s218 = scalar_lea.vmem %s1, %s217
          %s219 = sadd.s32 %s21, 1
          %s220 = smul.u32 %s219, 4
          %s221 = smul.u32 2, %s220
        $region32: #{tpu_custom_call.1} parent=23 // pred_fallthru
          _
      $region24: #{tpu_custom_call.1} parent=5 // pred_fallthru
        _
      %p222 = scmp.le.s32.totalorder 1, %s13
      %p223 = scmp.lt.s32.totalorder %s13, 5
      %p224 = pnand %p222, %p223
      %p225 = pneg %p224
      // Predicated region
      $region33: #{tpu_custom_call.1} parent=5 // pred_check
        _
      $region34: #{tpu_custom_call.1} parent=5 // pred_check_branch
        %227 = sbr.rel (%p224) target = $region36
      $region35: #{tpu_custom_call.1} parent=5 // pred_region
        %s228 = ssub.s32 %s13, 1
        %s229 = smul.u32 8, %s23
        %s230 = ssub.s32 18, %s229
        %p231 = scmp.lt.s32.totalorder %s230, 8
        %s232 = scalar_select %p231, %s230, 8
        %s233 = smul.u32 4, %s232
        %s234 = smul.u32 %s233, 3
        %p235 = scmp.lt.s32.totalorder %s22, 1
        %s236 = scalar_select %p235, %s22, 1
        %p237 = scmp.lt.s32.totalorder %s229, 17
        %s238 = scalar_select %p237, %s229, 17
        %s239 = smul.addr %s238, 3
        %s240 = smul.addr %s236, 54
        %s241 = sadd.s32 %s239, %s240
        %s242 = smul.addr %s241, 4
        %s243 = scalar_lea.vmem %s0, %s242
        %p244 = pneg %p53
        %p245 = pneg %p50
        %s246 = sadd.s32 %s23, 1
        %s247 = smul.u32 %s246, 4
        %s248 = smul.u32 2, %s247
        %p249 = scmp.lt.s32.totalorder %s22, 1
        %s250 = scalar_select %p249, %s22, 1
        %p251 = scmp.lt.s32.totalorder %s248, 17
        %s252 = scalar_select %p251, %s248, 17
        %s253 = smul.addr %s252, 3
        %s254 = smul.addr %s250, 54
        %s255 = sadd.s32 %s253, %s254
        %s256 = smul.addr %s255, 4
        %s257 = scalar_lea.vmem %s1, %s256
        %p258 = pneg %p85
        %p259 = pneg %p82
        %p260 = pneg %p106
        %p261 = pneg %p103
        %p262 = pneg %p127
        %p263 = pneg %p124
        %p264 = pneg %p155
        %p265 = pneg %p152
        %s266 = sand.u32 %s142, 1
        %s267 = scalar_lea.sflag [#allocation3], %s266
        %s268 = sand.u32 %s142, 1
        %s269 = smul.addr %s268, 128
        %s270 = scalar_lea.vmem [#allocation2], %s269
        %s271 = smul.u32 8, %s23
        %s272 = ssub.s32 18, %s271
        %p273 = scmp.lt.s32.totalorder %s272, 8
        %s274 = scalar_select %p273, %s272, 8
        %s275 = smul.u32 4, %s274
        %s276 = smul.u32 %s275, 3
        %p277 = scmp.lt.s32.totalorder %s22, 1
        %s278 = scalar_select %p277, %s22, 1
        %p279 = scmp.lt.s32.totalorder %s271, 17
        %s280 = scalar_select %p279, %s271, 17
        %s281 = smul.addr %s280, 3
        %s282 = smul.addr %s278, 54
        %s283 = sadd.s32 %s281, %s282
        %s284 = smul.addr %s283, 4
        %s285 = scalar_lea.vmem %s0, %s284
        %s286 = smul.u32 8, %s23
        %s287 = ssub.s32 18, %s286
        %p288 = scmp.lt.s32.totalorder %s287, 8
        %s289 = scalar_select %p288, %s287, 8
        %s290 = smul.u32 4, %s289
        %s291 = smul.u32 %s290, 3
        %s292 = sadd.s32 %s23, 1
        %s293 = smul.u32 %s292, 4
        %s294 = smul.u32 2, %s293
        %p295 = scmp.lt.s32.totalorder %s22, 1
        %s296 = scalar_select %p295, %s22, 1
        %p297 = scmp.lt.s32.totalorder %s294, 17
        %s298 = scalar_select %p297, %s294, 17
        %s299 = smul.addr %s298, 3
        %s300 = smul.addr %s296, 54
        %s301 = sadd.s32 %s299, %s300
        %s302 = smul.addr %s301, 4
        %s303 = scalar_lea.vmem %s1, %s302
        %s304 = sadd.s32 %s23, 1
        %s305 = smul.u32 %s304, 4
        %s306 = smul.u32 2, %s305
        %s307 = smul.u32 8, %s23
        %v309 = vld [vmem:[%s285] sm:$0xf]
        %v310 = vld [vmem:[%s285 + $0x4] sm:$0xf]
        %v311 = vld [vmem:[%s285 + $0x8] sm:$0x1]
        %v312 = vld [vmem:[%s285 + $0xc] sm:$0xf]
        %v313 = vld [vmem:[%s285 + $0x10] sm:$0xf]
        %v314 = vld [vmem:[%s285 + $0x14] sm:$0x1]
        %v315 = vld [vmem:[%s285 + $0x18] sm:$0xf]
        %v316 = vld [vmem:[%s285 + $0x1c] sm:$0xf]
        %v317 = vld [vmem:[%s285 + $0x20] sm:$0x1]
        %v318 = vld [vmem:[%s285 + $0x24] sm:$0xf]
        %v319 = vld [vmem:[%s285 + $0x28] sm:$0xf]
        %v320 = vld [vmem:[%s285 + $0x2c] sm:$0x1]
        %v321 = vld [vmem:[%s285 + $0x30] sm:$0xf]
        %v322 = vld [vmem:[%s285 + $0x34] sm:$0xf]
        %v323 = vld [vmem:[%s285 + $0x38] sm:$0x1]
        %v324 = vld [vmem:[%s285 + $0x3c] sm:$0xf]
        %v325 = vld [vmem:[%s285 + $0x40] sm:$0xf]
        %v326 = vld [vmem:[%s285 + $0x44] sm:$0x1]
        %v327 = vld [vmem:[%s285 + $0x48] sm:$0xf]
        %v328 = vld [vmem:[%s285 + $0x4c] sm:$0xf]
        %v329 = vld [vmem:[%s285 + $0x50] sm:$0x1]
        %v330 = vld [vmem:[%s285 + $0x54] sm:$0xf]
        %v331 = vld [vmem:[%s285 + $0x58] sm:$0xf]
        %v332 = vld [vmem:[%s285 + $0x5c] sm:$0x1]
        %v333 = vld [vmem:[%s303] sm:$0xf]
        %v334 = vld [vmem:[%s303 + $0x4] sm:$0xf]
        %v335 = vld [vmem:[%s303 + $0x8] sm:$0x1]
        %v336 = vld [vmem:[%s303 + $0xc] sm:$0xf]
        %v337 = vld [vmem:[%s303 + $0x10] sm:$0xf]
        %v338 = vld [vmem:[%s303 + $0x14] sm:$0x1]
        %v355 = vunpack.c.l.b16 %v309
        %v356 = vunpack.c.l.b16 %v310
        %v357 = vunpack.c.l.b16 %v312
        %v358 = vunpack.c.l.b16 %v313
        %v359 = vunpack.c.l.b16 %v315
        %v360 = vunpack.c.l.b16 %v316
        %v361 = vunpack.c.l.b16 %v318
        %v362 = vunpack.c.l.b16 %v319
        %v363 = vunpack.c.l.b16 %v321
        %v364 = vunpack.c.l.b16 %v322
        %v365 = vunpack.c.l.b16 %v324
        %v366 = vunpack.c.l.b16 %v325
        %v367 = vunpack.c.l.b16 %v327
        %v368 = vunpack.c.l.b16 %v328
        %v369 = vunpack.c.l.b16 %v330
        %v370 = vunpack.c.l.b16 %v331
        %v371 = vpack.c.b16 %v356, %v355
        %v372 = vpack.c.b16 %v358, %v357
        %v373 = vpack.c.b16 %v360, %v359
        %v374 = vpack.c.b16 %v362, %v361
        %v375 = vpack.c.b16 %v364, %v363
        %v376 = vpack.c.b16 %v366, %v365
        %v377 = vpack.c.b16 %v368, %v367
        %v378 = vpack.c.b16 %v370, %v369
        %v387 = vunpack.c.l.b16 %v311
        %v388 = vunpack.c.l.b16 %v314
        %v389 = vunpack.c.l.b16 %v317
        %v390 = vunpack.c.l.b16 %v320
        %v391 = vunpack.c.l.b16 %v323
        %v392 = vunpack.c.l.b16 %v326
        %v393 = vunpack.c.l.b16 %v329
        %v394 = vunpack.c.l.b16 %v332
        %v395 = vpack.c.b16 %v387, %v387
        %v396 = vpack.c.b16 %v388, %v388
        %v397 = vpack.c.b16 %v389, %v389
        %v398 = vpack.c.b16 %v390, %v390
        %v399 = vpack.c.b16 %v391, %v391
        %v400 = vpack.c.b16 %v392, %v392
        %v401 = vpack.c.b16 %v393, %v393
        %v402 = vpack.c.b16 %v394, %v394
        %vm403 = vsmask.f32 7424
        %v405 = vshrl.u32 %v371, 16
        %v407 = vshll.u32 %v371, 16
        %v409 = vrot.slane %v407, 1
        %v410 = vor.u32 %v405, %v409
        %v412 = vshll.u32 %v395, 16
        %v414 = vrot.slane %v412, 1
        %v415 = vsel %vm403, %v410, %v414
        %v417 = vshrl.u32 %v372, 16
        %v419 = vshll.u32 %v372, 16
        %v421 = vrot.slane %v419, 1
        %v422 = vor.u32 %v417, %v421
        %v424 = vshll.u32 %v396, 16
        %v426 = vrot.slane %v424, 1
        %v427 = vsel %vm403, %v422, %v426
        %v429 = vshrl.u32 %v373, 16
        %v431 = vshll.u32 %v373, 16
        %v433 = vrot.slane %v431, 1
        %v434 = vor.u32 %v429, %v433
        %v436 = vshll.u32 %v397, 16
        %v438 = vrot.slane %v436, 1
        %v439 = vsel %vm403, %v434, %v438
        %v441 = vshrl.u32 %v374, 16
        %v443 = vshll.u32 %v374, 16
        %v445 = vrot.slane %v443, 1
        %v446 = vor.u32 %v441, %v445
        %v448 = vshll.u32 %v398, 16
        %v450 = vrot.slane %v448, 1
        %v451 = vsel %vm403, %v446, %v450
        %v453 = vshrl.u32 %v375, 16
        %v455 = vshll.u32 %v375, 16
        %v457 = vrot.slane %v455, 1
        %v458 = vor.u32 %v453, %v457
        %v460 = vshll.u32 %v399, 16
        %v462 = vrot.slane %v460, 1
        %v463 = vsel %vm403, %v458, %v462
        %v465 = vshrl.u32 %v376, 16
        %v467 = vshll.u32 %v376, 16
        %v469 = vrot.slane %v467, 1
        %v470 = vor.u32 %v465, %v469
        %v472 = vshll.u32 %v400, 16
        %v474 = vrot.slane %v472, 1
        %v475 = vsel %vm403, %v470, %v474
        %v477 = vshrl.u32 %v377, 16
        %v479 = vshll.u32 %v377, 16
        %v481 = vrot.slane %v479, 1
        %v482 = vor.u32 %v477, %v481
        %v484 = vshll.u32 %v401, 16
        %v486 = vrot.slane %v484, 1
        %v487 = vsel %vm403, %v482, %v486
        %v489 = vshrl.u32 %v378, 16
        %v491 = vshll.u32 %v378, 16
        %v493 = vrot.slane %v491, 1
        %v494 = vor.u32 %v489, %v493
        %v496 = vshll.u32 %v402, 16
        %v498 = vrot.slane %v496, 1
        %v499 = vsel %vm403, %v494, %v498
        %500 = vrot.lane.b32.xlu0 %v415, 4
        %v501 = vpop.permute.xlu0 %500
        %502 = vrot.lane.b32.xlu0 %v427, 4
        %v503 = vpop.permute.xlu0 %502
        %504 = vrot.lane.b32.xlu0 %v439, 4
        %v505 = vpop.permute.xlu0 %504
        %506 = vrot.lane.b32.xlu0 %v451, 4
        %v507 = vpop.permute.xlu0 %506
        %508 = vrot.lane.b32.xlu0 %v463, 4
        %v509 = vpop.permute.xlu0 %508
        %510 = vrot.lane.b32.xlu0 %v475, 4
        %v511 = vpop.permute.xlu0 %510
        %512 = vrot.lane.b32.xlu0 %v487, 4
        %v513 = vpop.permute.xlu0 %512
        %514 = vrot.lane.b32.xlu0 %v499, 4
        %v515 = vpop.permute.xlu0 %514
        %vm516 = vcmask 1046528
        %v517 = vrot.slane %v371, 1
        %v518 = vrot.slane %v395, 1
        %v519 = vsel %vm516, %v517, %v518
        %v520 = vrot.slane %v372, 1
        %v521 = vrot.slane %v396, 1
        %v522 = vsel %vm516, %v520, %v521
        %v523 = vrot.slane %v373, 1
        %v524 = vrot.slane %v397, 1
        %v525 = vsel %vm516, %v523, %v524
        %v526 = vrot.slane %v374, 1
        %v527 = vrot.slane %v398, 1
        %v528 = vsel %vm516, %v526, %v527
        %v529 = vrot.slane %v375, 1
        %v530 = vrot.slane %v399, 1
        %v531 = vsel %vm516, %v529, %v530
        %v532 = vrot.slane %v376, 1
        %v533 = vrot.slane %v400, 1
        %v534 = vsel %vm516, %v532, %v533
        %v535 = vrot.slane %v377, 1
        %v536 = vrot.slane %v401, 1
        %v537 = vsel %vm516, %v535, %v536
        %v538 = vrot.slane %v378, 1
        %v539 = vrot.slane %v402, 1
        %v540 = vsel %vm516, %v538, %v539
        %541 = vrot.lane.b32.xlu0 %v519, 8
        %v542 = vpop.permute.xlu0 %541
        %543 = vrot.lane.b32.xlu0 %v522, 8
        %v544 = vpop.permute.xlu0 %543
        %545 = vrot.lane.b32.xlu0 %v525, 8
        %v546 = vpop.permute.xlu0 %545
        %547 = vrot.lane.b32.xlu0 %v528, 8
        %v548 = vpop.permute.xlu0 %547
        %549 = vrot.lane.b32.xlu0 %v531, 8
        %v550 = vpop.permute.xlu0 %549
        %551 = vrot.lane.b32.xlu0 %v534, 8
        %v552 = vpop.permute.xlu0 %551
        %553 = vrot.lane.b32.xlu0 %v537, 8
        %v554 = vpop.permute.xlu0 %553
        %555 = vrot.lane.b32.xlu0 %v540, 8
        %v556 = vpop.permute.xlu0 %555
        %v559 = vunpack.c.l.b16 %v333
        %v560 = vunpack.c.l.b16 %v334
        %v561 = vpack.c.b16 %v560, %v559
        %562 = vrot.lane.b32.xlu0 %v372, 12
        %v563 = vpop.permute.xlu0 %562
        %564 = vrot.lane.b32.xlu0 %v373, 12
        %v565 = vpop.permute.xlu0 %564
        %566 = vrot.lane.b32.xlu0 %v374, 12
        %v567 = vpop.permute.xlu0 %566
        %568 = vrot.lane.b32.xlu0 %v375, 12
        %v569 = vpop.permute.xlu0 %568
        %570 = vrot.lane.b32.xlu0 %v376, 12
        %v571 = vpop.permute.xlu0 %570
        %572 = vrot.lane.b32.xlu0 %v377, 12
        %v573 = vpop.permute.xlu0 %572
        %574 = vrot.lane.b32.xlu0 %v378, 12
        %v575 = vpop.permute.xlu0 %574
        %576 = vrot.lane.b32.xlu0 %v561, 12
        %v577 = vpop.permute.xlu0 %576
        %v579 = vunpack.c.l.b16 %v335
        %v580 = vpack.c.b16 %v579, %v579
        %v582 = vshrl.u32 %v561, 16
        %v584 = vshll.u32 %v561, 16
        %v586 = vrot.slane %v584, 1
        %v587 = vor.u32 %v582, %v586
        %v589 = vshll.u32 %v580, 16
        %v591 = vrot.slane %v589, 1
        %v592 = vsel %vm403, %v587, %v591
        %593 = vrot.lane.b32.xlu0 %v427, 16
        %v594 = vpop.permute.xlu0 %593
        %595 = vrot.lane.b32.xlu0 %v439, 16
        %v596 = vpop.permute.xlu0 %595
        %597 = vrot.lane.b32.xlu0 %v451, 16
        %v598 = vpop.permute.xlu0 %597
        %599 = vrot.lane.b32.xlu0 %v463, 16
        %v600 = vpop.permute.xlu0 %599
        %601 = vrot.lane.b32.xlu0 %v475, 16
        %v602 = vpop.permute.xlu0 %601
        %603 = vrot.lane.b32.xlu0 %v487, 16
        %v604 = vpop.permute.xlu0 %603
        %605 = vrot.lane.b32.xlu0 %v499, 16
        %v606 = vpop.permute.xlu0 %605
        %607 = vrot.lane.b32.xlu0 %v592, 16
        %v608 = vpop.permute.xlu0 %607
        %v609 = vrot.slane %v561, 1
        %v610 = vrot.slane %v580, 1
        %v611 = vsel %vm516, %v609, %v610
        %612 = vrot.lane.b32.xlu0 %v522, 20
        %v613 = vpop.permute.xlu0 %612
        %614 = vrot.lane.b32.xlu0 %v525, 20
        %v615 = vpop.permute.xlu0 %614
        %616 = vrot.lane.b32.xlu0 %v528, 20
        %v617 = vpop.permute.xlu0 %616
        %618 = vrot.lane.b32.xlu0 %v531, 20
        %v619 = vpop.permute.xlu0 %618
        %620 = vrot.lane.b32.xlu0 %v534, 20
        %v621 = vpop.permute.xlu0 %620
        %622 = vrot.lane.b32.xlu0 %v537, 20
        %v623 = vpop.permute.xlu0 %622
        %624 = vrot.lane.b32.xlu0 %v540, 20
        %v625 = vpop.permute.xlu0 %624
        %626 = vrot.lane.b32.xlu0 %v611, 20
        %v627 = vpop.permute.xlu0 %626
        %v630 = vunpack.c.l.b16 %v336
        %v631 = vunpack.c.l.b16 %v337
        %v632 = vpack.c.b16 %v631, %v630
        %633 = vrot.lane.b32.xlu0 %v373, 24
        %v634 = vpop.permute.xlu0 %633
        %635 = vrot.lane.b32.xlu0 %v374, 24
        %v636 = vpop.permute.xlu0 %635
        %637 = vrot.lane.b32.xlu0 %v375, 24
        %v638 = vpop.permute.xlu0 %637
        %639 = vrot.lane.b32.xlu0 %v376, 24
        %v640 = vpop.permute.xlu0 %639
        %641 = vrot.lane.b32.xlu0 %v377, 24
        %v642 = vpop.permute.xlu0 %641
        %643 = vrot.lane.b32.xlu0 %v378, 24
        %v644 = vpop.permute.xlu0 %643
        %645 = vrot.lane.b32.xlu0 %v561, 24
        %v646 = vpop.permute.xlu0 %645
        %647 = vrot.lane.b32.xlu0 %v632, 24
        %v648 = vpop.permute.xlu0 %647
        %v650 = vunpack.c.l.b16 %v338
        %v651 = vpack.c.b16 %v650, %v650
        %v653 = vshrl.u32 %v632, 16
        %v655 = vshll.u32 %v632, 16
        %v657 = vrot.slane %v655, 1
        %v658 = vor.u32 %v653, %v657
        %v660 = vshll.u32 %v651, 16
        %v662 = vrot.slane %v660, 1
        %v663 = vsel %vm403, %v658, %v662
        %664 = vrot.lane.b32.xlu0 %v439, 28
        %v665 = vpop.permute.xlu0 %664
        %666 = vrot.lane.b32.xlu0 %v451, 28
        %v667 = vpop.permute.xlu0 %666
        %668 = vrot.lane.b32.xlu0 %v463, 28
        %v669 = vpop.permute.xlu0 %668
        %670 = vrot.lane.b32.xlu0 %v475, 28
        %v671 = vpop.permute.xlu0 %670
        %672 = vrot.lane.b32.xlu0 %v487, 28
        %v673 = vpop.permute.xlu0 %672
        %674 = vrot.lane.b32.xlu0 %v499, 28
        %v675 = vpop.permute.xlu0 %674
        %676 = vrot.lane.b32.xlu0 %v592, 28
        %v677 = vpop.permute.xlu0 %676
        %678 = vrot.lane.b32.xlu0 %v663, 28
        %v679 = vpop.permute.xlu0 %678
        %v680 = vrot.slane %v632, 1
        %v681 = vrot.slane %v651, 1
        %v682 = vsel %vm516, %v680, %v681
        %683 = vrot.lane.b32.xlu0 %v525, 32
        %v684 = vpop.permute.xlu0 %683
        %685 = vrot.lane.b32.xlu0 %v528, 32
        %v686 = vpop.permute.xlu0 %685
        %687 = vrot.lane.b32.xlu0 %v531, 32
        %v688 = vpop.permute.xlu0 %687
        %689 = vrot.lane.b32.xlu0 %v534, 32
        %v690 = vpop.permute.xlu0 %689
        %691 = vrot.lane.b32.xlu0 %v537, 32
        %v692 = vpop.permute.xlu0 %691
        %693 = vrot.lane.b32.xlu0 %v540, 32
        %v694 = vpop.permute.xlu0 %693
        %695 = vrot.lane.b32.xlu0 %v611, 32
        %v696 = vpop.permute.xlu0 %695
        %697 = vrot.lane.b32.xlu0 %v682, 32
        %v698 = vpop.permute.xlu0 %697
        %vm699 = vcmask 31744
        %v701 = vsel %vm699, %v371, %v501
        %v703 = vsel %vm699, %v372, %v503
        %v705 = vsel %vm699, %v373, %v505
        %v707 = vsel %vm699, %v374, %v507
        %v709 = vsel %vm699, %v375, %v509
        %v711 = vsel %vm699, %v376, %v511
        %v713 = vsel %vm699, %v377, %v513
        %v715 = vsel %vm699, %v378, %v515
        %vm716 = vcmask 64512
        %v718 = vsel %vm716, %v701, %v542
        %v720 = vsel %vm716, %v703, %v544
        %v722 = vsel %vm716, %v705, %v546
        %v724 = vsel %vm716, %v707, %v548
        %v726 = vsel %vm716, %v709, %v550
        %v728 = vsel %vm716, %v711, %v552
        %v730 = vsel %vm716, %v713, %v554
        %v732 = vsel %vm716, %v715, %v556
        %vm733 = vcmask 97280
        %v735 = vsel %vm733, %v718, %v563
        %v737 = vsel %vm733, %v720, %v565
        %v739 = vsel %vm733, %v722, %v567
        %v741 = vsel %vm733, %v724, %v569
        %v743 = vsel %vm733, %v726, %v571
        %v745 = vsel %vm733, %v728, %v573
        %v747 = vsel %vm733, %v730, %v575
        %v749 = vsel %vm733, %v732, %v577
        %vm750 = vcmask 130048
        %v752 = vsel %vm750, %v735, %v594
        %v754 = vsel %vm750, %v737, %v596
        %v756 = vsel %vm750, %v739, %v598
        %v758 = vsel %vm750, %v741, %v600
        %v760 = vsel %vm750, %v743, %v602
        %v762 = vsel %vm750, %v745, %v604
        %v764 = vsel %vm750, %v747, %v606
        %v766 = vsel %vm750, %v749, %v608
        %vm767 = vcmask 162816
        %v769 = vsel %vm767, %v752, %v613
        %v771 = vsel %vm767, %v754, %v615
        %v773 = vsel %vm767, %v756, %v617
        %v775 = vsel %vm767, %v758, %v619
        %v777 = vsel %vm767, %v760, %v621
        %v779 = vsel %vm767, %v762, %v623
        %v781 = vsel %vm767, %v764, %v625
        %v783 = vsel %vm767, %v766, %v627
        %vm784 = vcmask 195584
        %v786 = vsel %vm784, %v769, %v634
        %v788 = vsel %vm784, %v771, %v636
        %v790 = vsel %vm784, %v773, %v638
        %v792 = vsel %vm784, %v775, %v640
        %v794 = vsel %vm784, %v777, %v642
        %v796 = vsel %vm784, %v779, %v644
        %v798 = vsel %vm784, %v781, %v646
        %v800 = vsel %vm784, %v783, %v648
        %vm801 = vcmask 228352
        %v803 = vsel %vm801, %v786, %v665
        %v805 = vsel %vm801, %v788, %v667
        %v807 = vsel %vm801, %v790, %v669
        %v809 = vsel %vm801, %v792, %v671
        %v811 = vsel %vm801, %v794, %v673
        %v813 = vsel %vm801, %v796, %v675
        %v815 = vsel %vm801, %v798, %v677
        %v817 = vsel %vm801, %v800, %v679
        %vm818 = vcmask 261120
        %v820 = vsel %vm818, %v803, %v684
        %v822 = vsel %vm818, %v805, %v686
        %v824 = vsel %vm818, %v807, %v688
        %v826 = vsel %vm818, %v809, %v690
        %v828 = vsel %vm818, %v811, %v692
        %v830 = vsel %vm818, %v813, %v694
        %v832 = vsel %vm818, %v815, %v696
        %v834 = vsel %vm818, %v817, %v698
        %v835 = vld [vmem:[%s2] sm:$0xf]
        %v836 = vld [vmem:[%s2 + $0x4] sm:$0xf]
        %v837 = vld [vmem:[%s2 + $0x8] sm:$0xf]
        %v838 = vld [vmem:[%s2 + $0xc] sm:$0xf]
        %v839 = vld [vmem:[%s2 + $0x10] sm:$0x3]
        %v840 = vld [vmem:[%s3] sm:$0x1]
        %v842 = vperm.slane %v840, 0
        %v849 = vunpack.c.l.b16 %v835
        %v850 = vunpack.c.l.b16 %v836
        %v851 = vunpack.c.l.b16 %v837
        %v852 = vunpack.c.l.b16 %v838
        %v853 = vunpack.c.l.b16 %v839
        %v854 = vpack.c.b16 %v850, %v849
        %v855 = vpack.c.b16 %v852, %v851
        %v856 = vpack.c.b16 %v853, %v853
        %vm859 = vcmask 293888
        %v860 = vsel %vm859, %v820, 0
        %v862 = vsel %vm859, %v822, 0
        %v864 = vsel %vm859, %v824, 0
        %v866 = vsel %vm859, %v826, 0
        %v868 = vsel %vm859, %v828, 0
        %v870 = vsel %vm859, %v830, 0
        %v872 = vsel %vm859, %v832, 0
        %v874 = vsel %vm859, %v834, 0
        %vm876 = vcmask 1041408
        %v878 = vsel %vm876, %v856, 0
        %880 = vmatpush.bf16.msra.mxu0 0
        %881 = vmatpush.bf16.msra.mxu0 0
        %882 = vmatpush.bf16.msra.mxu0 0
        %883 = vmatpush.bf16.msra.mxu0 0
        %884 = vmatpush.bf16.msra.mxu0 0
        %885 = vmatpush.bf16.msra.mxu0 %v878
        %886 = vmatpush.bf16.msra.mxu0 %v855
        %887 = vmatpush.bf16.msra.mxu0 %v854
        %888 = vmatmul.bf16.gmra.mxu0 %v860
        %v889 = vpop.f32.mrf.mxu0
        %v890 = vadd.f32 %v842, %v889
        %v891 = vpop.f32.mrf.mxu0
        %v892 = vadd.f32 %v842, %v891
        %893 = vmatmul.bf16.gmra.mxu0 %v862
        %v894 = vpop.f32.mrf.mxu0
        %v895 = vadd.f32 %v842, %v894
        %v896 = vpop.f32.mrf.mxu0
        %v897 = vadd.f32 %v842, %v896
        %898 = vmatmul.bf16.gmra.mxu0 %v864
        %v899 = vpop.f32.mrf.mxu0
        %v900 = vadd.f32 %v842, %v899
        %v901 = vpop.f32.mrf.mxu0
        %v902 = vadd.f32 %v842, %v901
        %903 = vmatmul.bf16.gmra.mxu0 %v866
        %v904 = vpop.f32.mrf.mxu0
        %v905 = vadd.f32 %v842, %v904
        %v906 = vpop.f32.mrf.mxu0
        %v907 = vadd.f32 %v842, %v906
        %908 = vmatmul.bf16.gmra.mxu0 %v868
        %v909 = vpop.f32.mrf.mxu0
        %v910 = vadd.f32 %v842, %v909
        %v911 = vpop.f32.mrf.mxu0
        %v912 = vadd.f32 %v842, %v911
        %913 = vmatmul.bf16.gmra.mxu0 %v870
        %v914 = vpop.f32.mrf.mxu0
        %v915 = vadd.f32 %v842, %v914
        %v916 = vpop.f32.mrf.mxu0
        %v917 = vadd.f32 %v842, %v916
        %918 = vmatmul.bf16.gmra.mxu0 %v872
        %v919 = vpop.f32.mrf.mxu0
        %v920 = vadd.f32 %v842, %v919
        %v921 = vpop.f32.mrf.mxu0
        %v922 = vadd.f32 %v842, %v921
        %923 = vmatmul.bf16.gmra.mxu0 %v874
        %v924 = vpop.f32.mrf.mxu0
        %v925 = vadd.f32 %v842, %v924
        %v926 = vpop.f32.mrf.mxu0
        %v927 = vadd.f32 %v842, %v926
        %928 = vdwg.mxu0
        %v929 = vmax.f32 %v890, 0.0
        %v930 = vmax.f32 %v892, 0.0
        %v931 = vmax.f32 %v895, 0.0
        %v932 = vmax.f32 %v897, 0.0
        %v933 = vmax.f32 %v900, 0.0
        %v934 = vmax.f32 %v902, 0.0
        %v935 = vmax.f32 %v905, 0.0
        %v936 = vmax.f32 %v907, 0.0
        %v937 = vmax.f32 %v910, 0.0
        %v938 = vmax.f32 %v912, 0.0
        %v939 = vmax.f32 %v915, 0.0
        %v940 = vmax.f32 %v917, 0.0
        %v941 = vmax.f32 %v920, 0.0
        %v942 = vmax.f32 %v922, 0.0
        %v943 = vmax.f32 %v925, 0.0
        %v944 = vmax.f32 %v927, 0.0
        %945 = vst [vmem:[%s270] sm:$0xff] %v929
        %946 = vst [vmem:[%s270 + $0x8] sm:$0xff] %v930
        %947 = vst [vmem:[%s270 + $0x10] sm:$0xff] %v931
        %948 = vst [vmem:[%s270 + $0x18] sm:$0xff] %v932
        %949 = vst [vmem:[%s270 + $0x20] sm:$0xff] %v933
        %950 = vst [vmem:[%s270 + $0x28] sm:$0xff] %v934
        %951 = vst [vmem:[%s270 + $0x30] sm:$0xff] %v935
        %952 = vst [vmem:[%s270 + $0x38] sm:$0xff] %v936
        %953 = vst [vmem:[%s270 + $0x40] sm:$0xff] %v937
        %954 = vst [vmem:[%s270 + $0x48] sm:$0xff] %v938
        %955 = vst [vmem:[%s270 + $0x50] sm:$0xff] %v939
        %956 = vst [vmem:[%s270 + $0x58] sm:$0xff] %v940
        %957 = vst [vmem:[%s270 + $0x60] sm:$0xff] %v941
        %958 = vst [vmem:[%s270 + $0x68] sm:$0xff] %v942
        %959 = vst [vmem:[%s270 + $0x70] sm:$0xff] %v943
        %960 = vst [vmem:[%s270 + $0x78] sm:$0xff] %v944
        %s961 = sand.u32 %s142, 1
        %s962 = scalar_lea.sflag [#allocation3], %s961
        %s963 = sand.u32 %s142, 1
        %s964 = smul.addr %s963, 128
        %s965 = scalar_lea.vmem [#allocation2], %s964
        // Predicated region
        $region37: #{tpu_custom_call.1} parent=35 // pred_check
          %p966 = pneg %p152
        $region38: #{tpu_custom_call.1} parent=35 // pred_check_branch
          %968 = sbr.rel (%p966) target = $region40
        $region39: #{tpu_custom_call.1} parent=35 // pred_region
          %s969 = smul.u32 8, %s23
          %971 = vsyncadd %s962, 0
          %s972 = smul.addr %s969, 2
          %s973 = smul.addr %s22, 32
          %s974 = sadd.s32 %s972, %s973
          %s975 = smul.addr %s974, 8
          %s976 = scalar_lea.hbm %s4, %s975
          %s977 = sshll.u32 %s965, 4
          %s978 = int_to_ptr.vmem [resolvable:$true] %s977
          %s979 = sshll.u32 %s976, 4
          %s980 = int_to_ptr.hbm [resolvable:$true] %s979
          %985 = dma.vmem_to_hbm [thread:$0]  %s978, 2048, %s980, %s962, 128, 128, 8
        $region40: #{tpu_custom_call.1} parent=35 // pred_fallthru
          _
      $region36: #{tpu_custom_call.1} parent=5 // pred_fallthru
        _
      %p986 = scmp.le.s32.totalorder 2, %s13
      // Predicated region
      $region41: #{tpu_custom_call.1} parent=5 // pred_check
        %p987 = pneg %p986
      $region42: #{tpu_custom_call.1} parent=5 // pred_check_branch
        %989 = sbr.rel (%p987) target = $region44
      $region43: #{tpu_custom_call.1} parent=5 // pred_region
        %s990 = ssub.s32 %s13, 2
        // Predicated region
        $region45: #{tpu_custom_call.1} parent=43 // pred_check
          %p991 = pneg %p158
        $region46: #{tpu_custom_call.1} parent=43 // pred_check_branch
          %993 = sbr.rel (%p991) target = $region48
        $region47: #{tpu_custom_call.1} parent=43 // pred_region
          %s994 = sand.u32 %s143, 1
          %s995 = scalar_lea.sflag [#allocation3], %s994
          %s996 = sand.u32 %s143, 1
          %s997 = smul.addr %s996, 128
          %s998 = scalar_lea.vmem [#allocation2], %s997
          %1000 = dma.done %s995, 2048
        $region48: #{tpu_custom_call.1} parent=43 // pred_fallthru
          _
      $region44: #{tpu_custom_call.1} parent=5 // pred_fallthru
        _
    $region6: #{tpu_custom_call.1} parent=1 // loop_footer
      %s17 = sadd.s32 1, %s13
    $region7: #{tpu_custom_call.1} parent=1 // loop_footer_branch
      %12 = sbr.rel target = $region3
    $region8: #{tpu_custom_call.1} parent=1 // loop_exit
      _
    %1001 = vsyncpa [#allocation3], 1
    %s1002 = scalar_lea.sflag [#allocation3], 1
    %1003 = vsyncpa %s1002, 1

</llo_original>
